<compile_context>
chip_gen: v5e
topology: v5e:2x2
jax: 0.10.0
libtpu: 0.0.40
codegen_flags: <defaults>
</compile_context>

<pallas_src>
import functools

import jax
import jax.numpy as jnp
from jax import lax
from jax.experimental import pallas as pl
from jax.experimental.pallas import tpu as pltpu


_VMEM_BUDGET = 36 * 1024 * 1024      # conservative tile budget (v7x has 64 MiB VMEM)
_VMEM_LIMIT_CAP = 48 * 1024 * 1024   # scoped-VMEM limit we request (safe on all gens)


def _round_up(x, m):
    return (x + m - 1) // m * m


def _vmem_bytes(tm, tp, d, itemsize):
    """Rough VMEM footprint for a (tm, tp) tile choice."""
    proto = 2 * d * tp * itemsize          # proto block (double-buffer worst case)
    anchor = 2 * tm * d * itemsize         # anchor block (double-buffered)
    small = 2 * tm * 4 * 2 + 3 * tm * 4    # labels + output blocks + f32 scratch rows
    logits = 3 * tm * tp * 4               # live f32 [tm, tp] temporaries (logits/exp)
    return proto + anchor + small + logits


def _protocon_kernel(a_ref, pt_ref, l_ref, o_ref, m_sc, s_sc, pk_sc, *,
                     loss_scale, n_true, p_true, needs_col_mask, tm, tp):
    # a_ref: [tm, d]  pt_ref: [d, tp]  l_ref: [tm, 1] int32  o_ref: [tm, 1] f32
    # m_sc / s_sc / pk_sc: [tm, 1] f32 running max / sum-exp / picked logit.
    i = pl.program_id(0)
    j = pl.program_id(1)
    last_j = pl.num_programs(1) - 1

    @pl.when(j == 0)
    def _():
        m_sc[...] = jnp.full(m_sc.shape, -jnp.inf, m_sc.dtype)
        s_sc[...] = jnp.zeros(s_sc.shape, s_sc.dtype)
        pk_sc[...] = jnp.zeros(pk_sc.shape, pk_sc.dtype)

    # K-major (tm, d) @ (d, tp) on the MXU, f32 accumulation, lane-dense result.
    logits = jnp.dot(a_ref[...], pt_ref[...], preferred_element_type=jnp.float32)

    col_ids = j * tp + lax.broadcasted_iota(jnp.int32, logits.shape, 1)

    # One-hot gather of the label logit.  Labels are always < p_true, so padded
    # columns can never be selected and the *unmasked* logits are safe here.
    labels = l_ref[...]                                           # [tm, 1] int32
    pk_sc[...] = pk_sc[...] + jnp.sum(
        jnp.where(col_ids == labels, logits, 0.0), axis=-1, keepdims=True)

    def _lse_update(lg):
        # Online (numerically stable) logsumexp across P tiles.
        m_prev = m_sc[...]                                        # [tm, 1]
        m_new = jnp.maximum(m_prev, jnp.max(lg, axis=-1, keepdims=True))
        s_sc[...] = (jnp.exp(m_prev - m_new) * s_sc[...]
                     + jnp.sum(jnp.exp(lg - m_new), axis=-1, keepdims=True))
        m_sc[...] = m_new

    if needs_col_mask:
        # Only the last P tile contains padded columns; interior tiles take an
        # unmasked fast path (no [tm, tp] compare+select on the hot loop).
        @pl.when(j < last_j)
        def _():
            _lse_update(logits)

        @pl.when(j == last_j)
        def _():
            _lse_update(jnp.where(col_ids < p_true, logits, -jnp.inf))
    else:
        _lse_update(logits)

    @pl.when(j == last_j)
    def _():
        lse = m_sc[...] + jnp.log(s_sc[...])                      # [tm, 1]
        loss = (lse - pk_sc[...]) * jnp.float32(loss_scale)
        row_ids = i * tm + lax.broadcasted_iota(jnp.int32, loss.shape, 0)
        loss = jnp.where(row_ids < n_true, loss, 0.0)             # zero padded rows
        o_ref[...] = loss.astype(o_ref.dtype)


def proto_con_loss(anchor_feature, proto_feature, anchor_labels,
                   temperature=0.07, base_temperature=0.07,
                   tm=None, tp=None, compute_dtype=jnp.bfloat16):
    """JAX/Pallas equivalent of ProtoConLoss.forward (scalar mean loss)."""
    n, d = anchor_feature.shape
    p, d2 = proto_feature.shape
    assert d == d2, (d, d2)

    compute_dtype = jnp.dtype(compute_dtype)
    itemsize = compute_dtype.itemsize

    # ---- tile sizes --------------------------------------------------------
    if tm is None:
        tm = min(256, _round_up(n, 8))
        # v7x has 2 TensorCores: make sure the "parallel" N axis has >= 2 tiles
        # whenever N allows, so megacore sharding actually engages.
        if n > 8 and _round_up(n, tm) // tm < 2:
            tm = _round_up((n + 1) // 2, 8)
    tm = max(8, _round_up(int(tm), 8))

    p_pad_full = _round_up(p, 128)
    if tp is None:
        # Prefer a fully VMEM-resident prototype block: with p_tiles == 1 the
        # proto block index is constant over the grid, so it is DMA'd exactly
        # once instead of being re-streamed n_tiles times.
        tp = p_pad_full
        while tp > 128 and _vmem_bytes(tm, tp, d, itemsize) > _VMEM_BUDGET:
            tp = max(128, _round_up(tp // 2, 128))
    tp = max(128, _round_up(int(tp), 128))   # lane dim of the logits tile / MXU N

    n_pad = _round_up(n, tm)
    p_pad = _round_up(p, tp)
    n_tiles = n_pad // tm
    p_tiles = p_pad // tp

    # ---- inputs ------------------------------------------------------------
    inv_temp = 1.0 / float(temperature)
    loss_scale = float(temperature) / float(base_temperature)

    # Fold 1/temperature into the anchor once, in f32, before the compute cast.
    a = (anchor_feature.astype(jnp.float32) * inv_temp).astype(compute_dtype)
    # Pre-transpose proto to [D, P]: plain K-major MXU matmul in the kernel and a
    # lane-dense proto DMA (P on lanes).
    pt = proto_feature.astype(compute_dtype).T                     # [d, p]

    labels = anchor_labels.reshape(-1).astype(jnp.int32)
    labels = jnp.clip(labels, 0, p - 1)        # guard out-of-range labels
    labels = labels.reshape(n, 1)

    if n_pad != n:
        a = jnp.pad(a, ((0, n_pad - n), (0, 0)))
        labels = jnp.pad(labels, ((0, n_pad - n), (0, 0)))
    if p_pad != p:
        pt = jnp.pad(pt, ((0, 0), (0, p_pad - p)))

    kernel = functools.partial(
        _protocon_kernel,
        loss_scale=loss_scale,
        n_true=n, p_true=p,
        needs_col_mask=(p_pad != p),
        tm=tm, tp=tp)

    # ---- cost / compiler params --------------------------------------------
    proto_bytes = (d * p_pad if p_tiles == 1 else n_tiles * d * p_pad) * itemsize
    cost = pl.CostEstimate(
        flops=2 * n_pad * p_pad * d,
        transcendentals=n_pad * p_pad,
        bytes_accessed=n_pad * d * itemsize + proto_bytes + n_pad * 4 + n_pad * 4)

    est = _vmem_bytes(tm, tp, d, itemsize)
    vmem_limit = int(min(max(2 * est, 32 * 1024 * 1024), _VMEM_LIMIT_CAP))

    # NOTE: when p_tiles == 1 the proto block index never changes, so Pallas only
    # issues its DMA once; the second pipeline buffer is dead weight but is already
    # accounted for in _vmem_bytes (pl.Buffered(1) could reclaim it).

    out = pl.pallas_call(
        kernel,
        out_shape=jax.ShapeDtypeStruct((n_pad, 1), jnp.float32),
        grid_spec=pltpu.PrefetchScalarGridSpec(
            num_scalar_prefetch=0,
            grid=(n_tiles, p_tiles),                    # P (reduction) axis innermost
            in_specs=[
                pl.BlockSpec((tm, d), lambda i, j: (i, 0)),    # anchor tile
                pl.BlockSpec((d, tp), lambda i, j: (0, j)),    # proto.T tile (resident if p_tiles==1)
                pl.BlockSpec((tm, 1), lambda i, j: (i, 0)),    # labels
            ],
            out_specs=pl.BlockSpec((tm, 1), lambda i, j: (i, 0)),
            scratch_shapes=[
                pltpu.VMEM((tm, 1), jnp.float32),       # running max
                pltpu.VMEM((tm, 1), jnp.float32),       # running sum-exp
                pltpu.VMEM((tm, 1), jnp.float32),       # picked (label) logit
            ]),
        compiler_params=pltpu.CompilerParams(
            dimension_semantics=("parallel", "arbitrary"),
            vmem_limit_bytes=vmem_limit),
        cost_estimate=cost,
    )(a, pt, labels)

    # Tiny final reduction (N scalars) in plain JAX keeps the N axis megacore-parallel.
    return jnp.sum(out) / n


def _reference(anchor, proto, labels, temperature=0.07, base_temperature=0.07):
    logits = jnp.matmul(anchor, proto.T,
                        precision=jax.lax.Precision.HIGHEST) / temperature
    lse = jax.scipy.special.logsumexp(logits, axis=-1)
    picked = jnp.take_along_axis(logits, labels.reshape(-1, 1), axis=-1)[:, 0]
    return (temperature / base_temperature) * jnp.mean(lse - picked)


if __name__ == "__main__":
    key = jax.random.PRNGKey(0)
    k1, k2, k3 = jax.random.split(key, 3)

    N, P, D = 24, 200, 64  # samples, prototypes, feature dim
    anchor = jax.random.normal(k1, (N, D), dtype=jnp.float32)
    proto = jax.random.normal(k2, (P, D), dtype=jnp.float32)
    anchor = anchor / jnp.linalg.norm(anchor, axis=-1, keepdims=True)
    proto = proto / jnp.linalg.norm(proto, axis=-1, keepdims=True)
    labels = jax.random.randint(k3, (N,), 0, P, dtype=jnp.int32)

    ref = jax.block_until_ready(_reference(anchor, proto, labels))

    # f32 compute path, default tiles: resident proto (p_tiles == 1), grid (2, 1).
    out_f32 = jax.block_until_ready(
        proto_con_loss(anchor, proto, labels, compute_dtype=jnp.float32))
    # f32 compute path, tiny tiles -> grid (3, 2): exercises the online logsumexp,
    # the padded-column mask on the last P tile (P=200 -> 256) and padded-row mask.
    out_small = jax.block_until_ready(
        proto_con_loss(anchor, proto, labels, tm=8, tp=128,
                       compute_dtype=jnp.float32))
    # Default fast path: bf16 operands, f32 MXU accumulation.
    out_bf16 = jax.block_until_ready(proto_con_loss(anchor, proto, labels))

    assert jnp.allclose(out_f32, ref, rtol=5e-4, atol=5e-4), (out_f32, ref)
    assert jnp.allclose(out_small, ref, rtol=5e-4, atol=5e-4), (out_small, ref)
    assert jnp.allclose(out_bf16, ref, rtol=2e-2, atol=5e-2), (out_bf16, ref)

    print("KERNEL_OK")
</pallas_src>

<mosaic_0001>
module attributes {stable_mosaic.version = 11 : i64} {
  func.func @_protocon_kernel(%arg0: i32, %arg1: i32, %arg2: memref<16x64xf32, #tpu.memory_space<vmem>>, %arg3: memref<64x256xf32, #tpu.memory_space<vmem>>, %arg4: memref<16x1xi32, #tpu.memory_space<vmem>>, %arg5: memref<16x1xf32, #tpu.memory_space<vmem>>, %arg6: memref<16x1xf32, #tpu.memory_space<vmem>>, %arg7: memref<16x1xf32, #tpu.memory_space<vmem>>, %arg8: memref<16x1xf32, #tpu.memory_space<vmem>>) attributes {dimension_semantics = [#tpu.dimension_semantics<parallel>, #tpu.dimension_semantics<arbitrary>], iteration_bounds = array<i64: 2, 1>, scalar_prefetch = 0 : i64, scratch_operands = 3 : i64, tpu.core_type = #tpu.core_type<tc>, window_params = [{transform_indices = @transform_0, window_bounds = array<i64: 16, 64>}, {transform_indices = @transform_1, window_bounds = array<i64: 64, 256>}, {transform_indices = @transform_2, window_bounds = array<i64: 16, 1>}, {transform_indices = @transform_3, window_bounds = array<i64: 16, 1>}]} {
    %c0_i32 = arith.constant 0 : i32
    %0 = arith.cmpi eq, %arg1, %c0_i32 : i32
    %1 = arith.extui %0 : i1 to i32
    %c0_i32_0 = arith.constant 0 : i32
    %2 = arith.cmpi ne, %1, %c0_i32_0 : i32
    scf.if %2 {
      %cst_18 = arith.constant 0xFF800000 : f32
      %29 = vector.broadcast %cst_18 : f32 to vector<16x1xf32>
      %c0_19 = arith.constant 0 : index
      %c0_20 = arith.constant 0 : index
      %30 = vector.load %arg6[%c0_19, %c0_20] : memref<16x1xf32, #tpu.memory_space<vmem>>, vector<16x1xf32>
      tpu.vector_store %arg6[%c0_19, %c0_20], %29 {strides = array<i32>} : memref<16x1xf32, #tpu.memory_space<vmem>>, vector<16x1xf32>,
      %cst_21 = arith.constant 0.000000e+00 : f32
      %31 = vector.broadcast %cst_21 : f32 to vector<16x1xf32>
      %c0_22 = arith.constant 0 : index
      %c0_23 = arith.constant 0 : index
      %32 = vector.load %arg7[%c0_22, %c0_23] : memref<16x1xf32, #tpu.memory_space<vmem>>, vector<16x1xf32>
      tpu.vector_store %arg7[%c0_22, %c0_23], %31 {strides = array<i32>} : memref<16x1xf32, #tpu.memory_space<vmem>>, vector<16x1xf32>,
      %cst_24 = arith.constant 0.000000e+00 : f32
      %33 = vector.broadcast %cst_24 : f32 to vector<16x1xf32>
      %c0_25 = arith.constant 0 : index
      %c0_26 = arith.constant 0 : index
      %34 = vector.load %arg8[%c0_25, %c0_26] : memref<16x1xf32, #tpu.memory_space<vmem>>, vector<16x1xf32>
      tpu.vector_store %arg8[%c0_25, %c0_26], %33 {strides = array<i32>} : memref<16x1xf32, #tpu.memory_space<vmem>>, vector<16x1xf32>,
    } else {
    }
    %c0 = arith.constant 0 : index
    %c0_1 = arith.constant 0 : index
    %3 = vector.load %arg2[%c0, %c0_1] : memref<16x64xf32, #tpu.memory_space<vmem>>, vector<16x64xf32>
    %c0_2 = arith.constant 0 : index
    %c0_3 = arith.constant 0 : index
    %4 = vector.load %arg3[%c0_2, %c0_3] : memref<64x256xf32, #tpu.memory_space<vmem>>, vector<64x256xf32>
    %cst = arith.constant dense<0.000000e+00> : vector<16x256xf32>
    %5 = tpu.matmul %3, %4, %cst {dimension_numbers = #tpu.dot_dimension_numbers<[1], [0], [0], [1], [0, 0, 1, 1], [], []>} : vector<16x64xf32>, vector<64x256xf32>, vector<16x256xf32> -> vector<16x256xf32>
    %c256_i32 = arith.constant 256 : i32
    %6 = arith.muli %arg1, %c256_i32 : i32
    %7 = tpu.iota {dimensions = array<i32: 1>} : vector<16x256xi32>
    %8 = vector.broadcast %6 : i32 to vector<16x256xi32>
    %9 = arith.addi %8, %7 : vector<16x256xi32>
    %c0_4 = arith.constant 0 : index
    %c0_5 = arith.constant 0 : index
    %10 = vector.load %arg4[%c0_4, %c0_5] : memref<16x1xi32, #tpu.memory_space<vmem>>, vector<16x1xi32>
    %c0_6 = arith.constant 0 : index
    %c0_7 = arith.constant 0 : index
    %11 = vector.load %arg8[%c0_6, %c0_7] : memref<16x1xf32, #tpu.memory_space<vmem>>, vector<16x1xf32>
    %12 = vector.broadcast %10 : vector<16x1xi32> to vector<16x256xi32>
    %13 = arith.cmpi eq, %9, %12 : vector<16x256xi32>
    %cst_8 = arith.constant 0.000000e+00 : f32
    %14 = vector.broadcast %cst_8 : f32 to vector<16x256xf32>
    %15 = arith.select %13, %5, %14 : vector<16x256xi1>, vector<16x256xf32>
    %cst_9 = arith.constant dense<0.000000e+00> : vector<16xf32>
    %16 = vector.multi_reduction <add>, %15, %cst_9 [1] : vector<16x256xf32> to vector<16xf32>
    %17 = vector.shape_cast %16 : vector<16xf32> to vector<16x1xf32>
    %18 = arith.addf %11, %17 : vector<16x1xf32>
    %c0_10 = arith.constant 0 : index
    %c0_11 = arith.constant 0 : index
    %19 = vector.load %arg8[%c0_10, %c0_11] : memref<16x1xf32, #tpu.memory_space<vmem>>, vector<16x1xf32>
    tpu.vector_store %arg8[%c0_10, %c0_11], %18 {strides = array<i32>} : memref<16x1xf32, #tpu.memory_space<vmem>>, vector<16x1xf32>,
    %c0_i32_12 = arith.constant 0 : i32
    %20 = arith.cmpi slt, %arg1, %c0_i32_12 : i32
    %21 = arith.extui %20 : i1 to i32
    %c0_i32_13 = arith.constant 0 : i32
    %22 = arith.cmpi ne, %21, %c0_i32_13 : i32
    scf.if %22 {
      %c0_18 = arith.constant 0 : index
      %c0_19 = arith.constant 0 : index
      %29 = vector.load %arg6[%c0_18, %c0_19] : memref<16x1xf32, #tpu.memory_space<vmem>>, vector<16x1xf32>
      %cst_20 = arith.constant dense<0xFF800000> : vector<16xf32>
      %30 = vector.multi_reduction <maximumf>, %5, %cst_20 [1] : vector<16x256xf32> to vector<16xf32>
      %31 = vector.shape_cast %30 : vector<16xf32> to vector<16x1xf32>
      %32 = arith.maximumf %29, %31 : vector<16x1xf32>
      %33 = arith.subf %29, %32 : vector<16x1xf32>
      %34 = math.exp %33 : vector<16x1xf32>
      %c0_21 = arith.constant 0 : index
      %c0_22 = arith.constant 0 : index
      %35 = vector.load %arg7[%c0_21, %c0_22] : memref<16x1xf32, #tpu.memory_space<vmem>>, vector<16x1xf32>
      %36 = arith.mulf %34, %35 : vector<16x1xf32>
      %37 = vector.broadcast %32 : vector<16x1xf32> to vector<16x256xf32>
      %38 = arith.subf %5, %37 : vector<16x256xf32>
      %39 = math.exp %38 : vector<16x256xf32>
      %cst_23 = arith.constant dense<0.000000e+00> : vector<16xf32>
      %40 = vector.multi_reduction <add>, %39, %cst_23 [1] : vector<16x256xf32> to vector<16xf32>
      %41 = vector.shape_cast %40 : vector<16xf32> to vector<16x1xf32>
      %42 = arith.addf %36, %41 : vector<16x1xf32>
      %c0_24 = arith.constant 0 : index
      %c0_25 = arith.constant 0 : index
      %43 = vector.load %arg7[%c0_24, %c0_25] : memref<16x1xf32, #tpu.memory_space<vmem>>, vector<16x1xf32>
      tpu.vector_store %arg7[%c0_24, %c0_25], %42 {strides = array<i32>} : memref<16x1xf32, #tpu.memory_space<vmem>>, vector<16x1xf32>,
      %c0_26 = arith.constant 0 : index
      %c0_27 = arith.constant 0 : index
      %44 = vector.load %arg6[%c0_26, %c0_27] : memref<16x1xf32, #tpu.memory_space<vmem>>, vector<16x1xf32>
      tpu.vector_store %arg6[%c0_26, %c0_27], %32 {strides = array<i32>} : memref<16x1xf32, #tpu.memory_space<vmem>>, vector<16x1xf32>,
    } else {
    }
    %c0_i32_14 = arith.constant 0 : i32
    %23 = arith.cmpi eq, %arg1, %c0_i32_14 : i32
    %24 = arith.extui %23 : i1 to i32
    %c0_i32_15 = arith.constant 0 : i32
    %25 = arith.cmpi ne, %24, %c0_i32_15 : i32
    scf.if %25 {
      %c200_i32 = arith.constant 200 : i32
      %29 = vector.broadcast %c200_i32 : i32 to vector<16x256xi32>
      %30 = arith.cmpi slt, %9, %29 : vector<16x256xi32>
      %cst_18 = arith.constant 0xFF800000 : f32
      %31 = vector.broadcast %cst_18 : f32 to vector<16x256xf32>
      %32 = arith.select %30, %5, %31 : vector<16x256xi1>, vector<16x256xf32>
      %c0_19 = arith.constant 0 : index
      %c0_20 = arith.constant 0 : index
      %33 = vector.load %arg6[%c0_19, %c0_20] : memref<16x1xf32, #tpu.memory_space<vmem>>, vector<16x1xf32>
      %cst_21 = arith.constant dense<0xFF800000> : vector<16xf32>
      %34 = vector.multi_reduction <maximumf>, %32, %cst_21 [1] : vector<16x256xf32> to vector<16xf32>
      %35 = vector.shape_cast %34 : vector<16xf32> to vector<16x1xf32>
      %36 = arith.maximumf %33, %35 : vector<16x1xf32>
      %37 = arith.subf %33, %36 : vector<16x1xf32>
      %38 = math.exp %37 : vector<16x1xf32>
      %c0_22 = arith.constant 0 : index
      %c0_23 = arith.constant 0 : index
      %39 = vector.load %arg7[%c0_22, %c0_23] : memref<16x1xf32, #tpu.memory_space<vmem>>, vector<16x1xf32>
      %40 = arith.mulf %38, %39 : vector<16x1xf32>
      %41 = vector.broadcast %36 : vector<16x1xf32> to vector<16x256xf32>
      %42 = arith.subf %32, %41 : vector<16x256xf32>
      %43 = math.exp %42 : vector<16x256xf32>
      %cst_24 = arith.constant dense<0.000000e+00> : vector<16xf32>
      %44 = vector.multi_reduction <add>, %43, %cst_24 [1] : vector<16x256xf32> to vector<16xf32>
      %45 = vector.shape_cast %44 : vector<16xf32> to vector<16x1xf32>
      %46 = arith.addf %40, %45 : vector<16x1xf32>
      %c0_25 = arith.constant 0 : index
      %c0_26 = arith.constant 0 : index
      %47 = vector.load %arg7[%c0_25, %c0_26] : memref<16x1xf32, #tpu.memory_space<vmem>>, vector<16x1xf32>
      tpu.vector_store %arg7[%c0_25, %c0_26], %46 {strides = array<i32>} : memref<16x1xf32, #tpu.memory_space<vmem>>, vector<16x1xf32>,
      %c0_27 = arith.constant 0 : index
      %c0_28 = arith.constant 0 : index
      %48 = vector.load %arg6[%c0_27, %c0_28] : memref<16x1xf32, #tpu.memory_space<vmem>>, vector<16x1xf32>
      tpu.vector_store %arg6[%c0_27, %c0_28], %36 {strides = array<i32>} : memref<16x1xf32, #tpu.memory_space<vmem>>, vector<16x1xf32>,
    } else {
    }
    %c0_i32_16 = arith.constant 0 : i32
    %26 = arith.cmpi eq, %arg1, %c0_i32_16 : i32
    %27 = arith.extui %26 : i1 to i32
    %c0_i32_17 = arith.constant 0 : i32
    %28 = arith.cmpi ne, %27, %c0_i32_17 : i32
    scf.if %28 {
      %c0_18 = arith.constant 0 : index
      %c0_19 = arith.constant 0 : index
      %29 = vector.load %arg6[%c0_18, %c0_19] : memref<16x1xf32, #tpu.memory_space<vmem>>, vector<16x1xf32>
      %c0_20 = arith.constant 0 : index
      %c0_21 = arith.constant 0 : index
      %30 = vector.load %arg7[%c0_20, %c0_21] : memref<16x1xf32, #tpu.memory_space<vmem>>, vector<16x1xf32>
      %31 = math.log %30 : vector<16x1xf32>
      %32 = arith.addf %29, %31 : vector<16x1xf32>
      %c0_22 = arith.constant 0 : index
      %c0_23 = arith.constant 0 : index
      %33 = vector.load %arg8[%c0_22, %c0_23] : memref<16x1xf32, #tpu.memory_space<vmem>>, vector<16x1xf32>
      %34 = arith.subf %32, %33 : vector<16x1xf32>
      %cst_24 = arith.constant 1.000000e+00 : f32
      %35 = vector.broadcast %cst_24 : f32 to vector<16x1xf32>
      %36 = arith.mulf %34, %35 : vector<16x1xf32>
      %c16_i32 = arith.constant 16 : i32
      %37 = arith.muli %arg0, %c16_i32 : i32
      %38 = tpu.iota {dimensions = array<i32: 0>} : vector<16x1xi32>
      %39 = vector.broadcast %37 : i32 to vector<16x1xi32>
      %40 = arith.addi %39, %38 : vector<16x1xi32>
      %c24_i32 = arith.constant 24 : i32
      %41 = vector.broadcast %c24_i32 : i32 to vector<16x1xi32>
      %42 = arith.cmpi slt, %40, %41 : vector<16x1xi32>
      %cst_25 = arith.constant 0.000000e+00 : f32
      %43 = vector.broadcast %cst_25 : f32 to vector<16x1xf32>
      %44 = arith.select %42, %36, %43 : vector<16x1xi1>, vector<16x1xf32>
      %c0_26 = arith.constant 0 : index
      %c0_27 = arith.constant 0 : index
      %45 = vector.load %arg5[%c0_26, %c0_27] : memref<16x1xf32, #tpu.memory_space<vmem>>, vector<16x1xf32>
      tpu.vector_store %arg5[%c0_26, %c0_27], %44 {strides = array<i32>} : memref<16x1xf32, #tpu.memory_space<vmem>>, vector<16x1xf32>,
    } else {
    }
    return
  }
  func.func @transform_0(%arg0: i32, %arg1: i32) -> (i32, i32) {
    %c0_i32 = arith.constant 0 : i32
    %c0_i32_0 = arith.constant 0 : i32
    return %arg0, %c0_i32 : i32, i32
  }
  func.func @transform_1(%arg0: i32, %arg1: i32) -> (i32, i32) {
    %c0_i32 = arith.constant 0 : i32
    %c0_i32_0 = arith.constant 0 : i32
    return %c0_i32, %arg1 : i32, i32
  }
  func.func @transform_2(%arg0: i32, %arg1: i32) -> (i32, i32) {
    %c0_i32 = arith.constant 0 : i32
    %c0_i32_0 = arith.constant 0 : i32
    return %arg0, %c0_i32 : i32, i32
  }
  func.func @transform_3(%arg0: i32, %arg1: i32) -> (i32, i32) {
    %c0_i32 = arith.constant 0 : i32
    %c0_i32_0 = arith.constant 0 : i32
    return %arg0, %c0_i32 : i32, i32
  }
}

</mosaic_0001>

<llo_original>
// kernel: tpu_custom_call.1
$region0: #{tpu_custom_call.1}
  #allocation0 [shape = 'u32[]', space=smem, size = 0x4, offset = 0x4, fixed_abs, tag = 'smem constant byte address 0x4 - core index']
  #allocation1 [shape = 'u32[72,128]{1,0:T(1,128)}', space=vmem, size = 0x9000, scoped, tag = 'internal scratch']
  #allocation2 [shape = 'f32[16,1]{1,0:T(8,128)}', space=vmem, size = 0x2000, scoped, tag = 'scratch operand']
  #allocation3 [shape = 'f32[16,1]{1,0:T(8,128)}', space=vmem, size = 0x2000, scoped, tag = 'scratch operand']
  #allocation4 [shape = 'f32[16,1]{1,0:T(8,128)}', space=vmem, size = 0x2000, scoped, tag = 'scratch operand']
  %s0 = inlined_call_operand.vmem [shape: f32[32,64], index: 0, kind: input, shape index: {}]
  %s1 = inlined_call_operand.hbm [shape: f32[64,256], index: 1, kind: input, shape index: {}]
  %s2 = inlined_call_operand.vmem [shape: s32[32,1], index: 2, kind: input, shape index: {}]
  %s3 = inlined_call_operand.vmem [shape: f32[32,1], index: 3, kind: output, shape index: {}]
  %s4 = sld [smem:[#allocation0]]
  $region61: #{tpu_custom_call.1} parent=0
    _
  %s6 = ssub.s32 1, %s4
  %s7 = scalar_select 0, %s6, %s4
  $region1: #{tpu_custom_call.1} parent=0
    #allocation5 [shape = 'u8[65536]{0}', space=vmem, size = 0x10000, scoped, tag = 'input window, operand 1, single buffered']
    #allocation6 [shape = 's32[2]{0}', space=sflag, size = 0x8, scoped, tag = 'scoped memory for tpu_custom_call.1']
    %8 = vsyncpa [#allocation6], 0
    loop: start=0, step=1, limit=4
    $region2: #{tpu_custom_call.1} parent=1 // loop_pre_header
      _
    $region3: #{tpu_custom_call.1} parent=1 // loop_header
      %s10 = sphi 0, %s14
      %p11 = scmp.ge.s32.totalorder %s10, 4
      %s17 = sphi 0, %s29
      %s18 = sphi 0, %s25
      %s19 = sphi 0, %s17
      %s20 = sphi 0, %s18
      %s21 = sphi 0, %s19
      %s22 = sphi 0, %s20
      %s32 = sphi 0, %s34
      %s35 = sphi 0, %s32
      %s36 = sphi 0, %s35
      %s52 = sphi 0, %s36
      %s58 = sphi 0, %s60
      %s61 = sphi 0, %s58
      %s62 = sphi 0, %s61
      %s78 = sphi 0, %s62
      %s84 = sphi 0, %s86
      %s87 = sphi 0, %s84
      %s88 = sphi 0, %s87
      %s104 = sphi 0, %s88
      %s110 = sphi 0, %s112
      %s113 = sphi 0, %s110
      %s114 = sphi 0, %s113
      %s130 = sphi 0, %s114
    $region4: #{tpu_custom_call.1} parent=1 // loop_header_branch
      %13 = sbr.rel (%p11) target = $region8
    $region5: #{tpu_custom_call.1} parent=1 // loop_body
      %s15 = ssub.s32 %s10, 1
      %s16 = ssub.s32 %s10, 2
      %s23 = sadd.s32 1, %s18
      %p24 = scmp.ge.s32.totalorder %s23, 1
      %s25 = scalar_select %p24, 0, %s23
      %s26 = sadd.s32 1, %s17
      %s27 = scalar_select %p24, %s26, %s17
      %p28 = scmp.ge.s32.totalorder %s27, 2
      %s29 = scalar_select %p28, 0, %s27
      %s30 = ssub.s32 %s17, %s29
      %p31 = scmp.eq.s32.totalorder %s30, 0
      %s33 = sadd.s32 %s32, 1
      %s34 = scalar_select %p31, %s32, %s33
      %p37 = pneg %p31
      %p38 = scmp.eq.s32.totalorder %s10, 1
      %p39 = por %p37, %p38
      %p40 = scmp.ne.s32.totalorder %s32, %s35
      %p41 = scmp.eq.s32.totalorder %s10, 0
      %p42 = por %p40, %p41
      %p43 = scmp.ne.s32.totalorder %s32, %s35
      %p44 = scmp.eq.s32.totalorder %s15, 1
      %p45 = por %p43, %p44
      %p46 = scmp.ne.s32.totalorder %s35, %s36
      %p47 = scmp.eq.s32.totalorder %s15, 0
      %p48 = por %p46, %p47
      %p49 = scmp.ne.s32.totalorder %s35, %s36
      %p50 = scmp.eq.s32.totalorder %s16, 1
      %p51 = por %p49, %p50
      %p53 = scmp.ne.s32.totalorder %s36, %s52
      %p54 = scmp.eq.s32.totalorder %s16, 0
      %p55 = por %p53, %p54
      %s56 = ssub.s32 %s18, %s25
      %p57 = scmp.eq.s32.totalorder %s56, 0
      %s59 = sadd.s32 %s58, 1
      %s60 = scalar_select %p57, %s58, %s59
      %p63 = pneg %p57
      %p64 = scmp.eq.s32.totalorder %s10, 1
      %p65 = por %p63, %p64
      %p66 = scmp.ne.s32.totalorder %s58, %s61
      %p67 = scmp.eq.s32.totalorder %s10, 0
      %p68 = por %p66, %p67
      %p69 = scmp.ne.s32.totalorder %s58, %s61
      %p70 = scmp.eq.s32.totalorder %s15, 1
      %p71 = por %p69, %p70
      %p72 = scmp.ne.s32.totalorder %s61, %s62
      %p73 = scmp.eq.s32.totalorder %s15, 0
      %p74 = por %p72, %p73
      %p75 = scmp.ne.s32.totalorder %s61, %s62
      %p76 = scmp.eq.s32.totalorder %s16, 1
      %p77 = por %p75, %p76
      %p79 = scmp.ne.s32.totalorder %s62, %s78
      %p80 = scmp.eq.s32.totalorder %s16, 0
      %p81 = por %p79, %p80
      %s82 = ssub.s32 %s17, %s29
      %p83 = scmp.eq.s32.totalorder %s82, 0
      %s85 = sadd.s32 %s84, 1
      %s86 = scalar_select %p83, %s84, %s85
      %p89 = pneg %p83
      %p90 = scmp.eq.s32.totalorder %s10, 1
      %p91 = por %p89, %p90
      %p92 = scmp.ne.s32.totalorder %s84, %s87
      %p93 = scmp.eq.s32.totalorder %s10, 0
      %p94 = por %p92, %p93
      %p95 = scmp.ne.s32.totalorder %s84, %s87
      %p96 = scmp.eq.s32.totalorder %s15, 1
      %p97 = por %p95, %p96
      %p98 = scmp.ne.s32.totalorder %s87, %s88
      %p99 = scmp.eq.s32.totalorder %s15, 0
      %p100 = por %p98, %p99
      %p101 = scmp.ne.s32.totalorder %s87, %s88
      %p102 = scmp.eq.s32.totalorder %s16, 1
      %p103 = por %p101, %p102
      %p105 = scmp.ne.s32.totalorder %s88, %s104
      %p106 = scmp.eq.s32.totalorder %s16, 0
      %p107 = por %p105, %p106
      %s108 = ssub.s32 %s17, %s29
      %p109 = scmp.eq.s32.totalorder %s108, 0
      %s111 = sadd.s32 %s110, 1
      %s112 = scalar_select %p109, %s110, %s111
      %p115 = pneg %p109
      %p116 = scmp.eq.s32.totalorder %s10, 1
      %p117 = por %p115, %p116
      %p118 = scmp.ne.s32.totalorder %s110, %s113
      %p119 = scmp.eq.s32.totalorder %s10, 0
      %p120 = por %p118, %p119
      %p121 = scmp.ne.s32.totalorder %s110, %s113
      %p122 = scmp.eq.s32.totalorder %s15, 1
      %p123 = por %p121, %p122
      %p124 = scmp.ne.s32.totalorder %s113, %s114
      %p125 = scmp.eq.s32.totalorder %s15, 0
      %p126 = por %p124, %p125
      %p127 = scmp.ne.s32.totalorder %s113, %s114
      %p128 = scmp.eq.s32.totalorder %s16, 1
      %p129 = por %p127, %p128
      %p131 = scmp.ne.s32.totalorder %s114, %s130
      %p132 = scmp.eq.s32.totalorder %s16, 0
      %p133 = por %p131, %p132
      %p134 = scmp.le.s32.totalorder 1, %s10
      %p135 = scmp.lt.s32.totalorder %s10, 3
      %p136 = pnand %p134, %p135
      %p137 = pneg %p136
      // Predicated region
      $region9: #{tpu_custom_call.1} parent=5 // pred_check
        _
      $region10: #{tpu_custom_call.1} parent=5 // pred_check_branch
        %139 = sbr.rel (%p136) target = $region12
      $region11: #{tpu_custom_call.1} parent=5 // pred_region
        %s140 = ssub.s32 %s10, 1
        // Predicated region
        $region13: #{tpu_custom_call.1} parent=11 // pred_check
          %p141 = pneg %p74
        $region14: #{tpu_custom_call.1} parent=11 // pred_check_branch
          %143 = sbr.rel (%p141) target = $region16
        $region15: #{tpu_custom_call.1} parent=11 // pred_region
          %s144 = smul.u32 2, %s20
          %146 = vsyncadd [#allocation6], 0
          %s147 = smul.addr %s144, 8
          %s148 = scalar_lea.hbm %s1, %s147
          %s149 = sshll.u32 %s148, 4
          %s150 = int_to_ptr.hbm [resolvable:$true] %s149
          %s151 = sshll.u32 [#allocation5], 4
          %s152 = int_to_ptr.vmem [resolvable:$true] %s151
          %157 = dma.hbm_to_vmem [thread:$0]  %s150, 2048, %s152, [#allocation6], 256, 256, 16
        $region16: #{tpu_custom_call.1} parent=11 // pred_fallthru
          _
      $region12: #{tpu_custom_call.1} parent=5 // pred_fallthru
        _
      %p158 = scmp.lt.s32.totalorder %s10, 2
      // Predicated region
      $region17: #{tpu_custom_call.1} parent=5 // pred_check
        %p159 = pneg %p158
      $region18: #{tpu_custom_call.1} parent=5 // pred_check_branch
        %161 = sbr.rel (%p159) target = $region20
      $region19: #{tpu_custom_call.1} parent=5 // pred_region
        // Predicated region
        $region21: #{tpu_custom_call.1} parent=19 // pred_check
          %p162 = pneg %p42
        $region22: #{tpu_custom_call.1} parent=19 // pred_check_branch
          %164 = sbr.rel (%p162) target = $region24
        $region23: #{tpu_custom_call.1} parent=19 // pred_region
          %s165 = smul.u32 2, %s17
          %p166 = scmp.lt.s32.totalorder %s165, 3
          %s167 = scalar_select %p166, %s165, 3
          %s168 = smul.addr %s167, 8
          %s169 = scalar_lea.vmem %s0, %s168
          %s170 = smul.u32 2, %s17
        $region24: #{tpu_custom_call.1} parent=19 // pred_fallthru
          _
        // Predicated region
        $region25: #{tpu_custom_call.1} parent=19 // pred_check
          %p171 = pneg %p94
        $region26: #{tpu_custom_call.1} parent=19 // pred_check_branch
          %173 = sbr.rel (%p171) target = $region28
        $region27: #{tpu_custom_call.1} parent=19 // pred_region
          %s174 = smul.u32 2, %s17
          %p175 = scmp.lt.s32.totalorder %s174, 3
          %s176 = scalar_select %p175, %s174, 3
          %s177 = smul.addr %s176, 8
          %s178 = scalar_lea.vmem %s2, %s177
          %s179 = smul.u32 2, %s17
        $region28: #{tpu_custom_call.1} parent=19 // pred_fallthru
          _
      $region20: #{tpu_custom_call.1} parent=5 // pred_fallthru
        _
      %p180 = scmp.le.s32.totalorder 1, %s10
      %p181 = scmp.lt.s32.totalorder %s10, 3
      %p182 = pnand %p180, %p181
      %p183 = pneg %p182
      // Predicated region
      $region29: #{tpu_custom_call.1} parent=5 // pred_check
        _
      $region30: #{tpu_custom_call.1} parent=5 // pred_check_branch
        %185 = sbr.rel (%p182) target = $region32
      $region31: #{tpu_custom_call.1} parent=5 // pred_region
        %s186 = ssub.s32 %s10, 1
        // Predicated region
        $region33: #{tpu_custom_call.1} parent=31 // pred_check
          %p187 = pneg %p74
        $region34: #{tpu_custom_call.1} parent=31 // pred_check_branch
          %189 = sbr.rel (%p187) target = $region36
        $region35: #{tpu_custom_call.1} parent=31 // pred_region
          %191 = dma.done [#allocation6], 2048
        $region36: #{tpu_custom_call.1} parent=31 // pred_fallthru
          _
        %s192 = smul.u32 2, %s19
        %p193 = scmp.lt.s32.totalorder %s192, 3
        %s194 = scalar_select %p193, %s192, 3
        %s195 = smul.addr %s194, 8
        %s196 = scalar_lea.vmem %s0, %s195
        %p197 = pneg %p48
        %p198 = pneg %p45
        %p199 = pneg %p74
        %p200 = pneg %p71
        %s201 = smul.u32 2, %s19
        %p202 = scmp.lt.s32.totalorder %s201, 3
        %s203 = scalar_select %p202, %s201, 3
        %s204 = smul.addr %s203, 8
        %s205 = scalar_lea.vmem %s2, %s204
        %p206 = pneg %p100
        %p207 = pneg %p97
        %p208 = pneg %p126
        %p209 = pneg %p123
        %s210 = smul.u32 2, %s19
        %p211 = scmp.lt.s32.totalorder %s210, 3
        %s212 = scalar_select %p211, %s210, 3
        %s213 = smul.addr %s212, 8
        %s214 = scalar_lea.vmem %s3, %s213
        %s215 = smul.u32 2, %s19
        %p216 = scmp.lt.s32.totalorder %s215, 3
        %s217 = scalar_select %p216, %s215, 3
        %s218 = smul.addr %s217, 8
        %s219 = scalar_lea.vmem %s0, %s218
        %s220 = smul.u32 2, %s19
        %s221 = smul.u32 2, %s20
        %s222 = smul.u32 2, %s19
        %p223 = scmp.lt.s32.totalorder %s222, 3
        %s224 = scalar_select %p223, %s222, 3
        %s225 = smul.addr %s224, 8
        %s226 = scalar_lea.vmem %s2, %s225
        %s227 = smul.u32 2, %s19
        %s228 = smul.u32 2, %s19
        %p229 = scmp.lt.s32.totalorder %s228, 3
        %s230 = scalar_select %p229, %s228, 3
        %s231 = smul.addr %s230, 8
        %s232 = scalar_lea.vmem %s3, %s231
        %s233 = smul.u32 2, %s19
        %p234 = scmp.eq.s32.totalorder %s20, 0
        // Predicated region
        $region37: #{tpu_custom_call.1} parent=31 // pred_check
          %p235 = pneg %p234
        $region38: #{tpu_custom_call.1} parent=31 // pred_check_branch
          %237 = sbr.rel (%p235) target = $region40
        $region39: #{tpu_custom_call.1} parent=31 // pred_region
          %vm238 = vcmask 7168
          %239 = vst.msk [vmem:[#allocation2] sm:$0xff] %vm238, -inf
          %240 = vst.msk [vmem:[#allocation2 + $0x8] sm:$0xff] %vm238, -inf
          %241 = vst.msk [vmem:[#allocation3] sm:$0xff] %vm238, 0.0
          %242 = vst.msk [vmem:[#allocation3 + $0x8] sm:$0xff] %vm238, 0.0
          %243 = vst.msk [vmem:[#allocation4] sm:$0xff] %vm238, 0.0
          %244 = vst.msk [vmem:[#allocation4 + $0x8] sm:$0xff] %vm238, 0.0
        $region40: #{tpu_custom_call.1} parent=31 // pred_fallthru
          _
        %v245 = vld [vmem:[%s219] sm:$0xff]
        %v246 = vld [vmem:[%s219 + $0x8] sm:$0xff]
        %v247 = vld [vmem:[#allocation5] sm:$0xff]
        %v248 = vld [vmem:[#allocation5 + $0x8] sm:$0xff]
        %v249 = vld [vmem:[#allocation5 + $0x10] sm:$0xff]
        %v250 = vld [vmem:[#allocation5 + $0x18] sm:$0xff]
        %v251 = vld [vmem:[#allocation5 + $0x20] sm:$0xff]
        %v252 = vld [vmem:[#allocation5 + $0x28] sm:$0xff]
        %v253 = vld [vmem:[#allocation5 + $0x30] sm:$0xff]
        %v254 = vld [vmem:[#allocation5 + $0x38] sm:$0xff]
        %v255 = vld [vmem:[#allocation5 + $0x40] sm:$0xff]
        %v256 = vld [vmem:[#allocation5 + $0x48] sm:$0xff]
        %v257 = vld [vmem:[#allocation5 + $0x50] sm:$0xff]
        %v258 = vld [vmem:[#allocation5 + $0x58] sm:$0xff]
        %v259 = vld [vmem:[#allocation5 + $0x60] sm:$0xff]
        %v260 = vld [vmem:[#allocation5 + $0x68] sm:$0xff]
        %v261 = vld [vmem:[#allocation5 + $0x70] sm:$0xff]
        %v262 = vld [vmem:[#allocation5 + $0x78] sm:$0xff]
        %vm263 = vcmask 523264
        %v265 = vsel %vm263, %v245, 0
        %v268 = vsel %vm263, %v246, 0
        %270 = vmatpush.msra.mxu0 0.0
        %271 = vmatpush.msra.mxu0 0.0
        %272 = vmatpush.msra.mxu0 0.0
        %273 = vmatpush.msra.mxu0 0.0
        %274 = vmatpush.msra.mxu0 0.0
        %275 = vmatpush.msra.mxu0 0.0
        %276 = vmatpush.msra.mxu0 0.0
        %277 = vmatpush.msra.mxu0 0.0
        %278 = vmatpush.msra.mxu0 %v261
        %279 = vmatpush.msra.mxu0 %v259
        %280 = vmatpush.msra.mxu0 %v257
        %281 = vmatpush.msra.mxu0 %v255
        %282 = vmatpush.msra.mxu0 %v253
        %283 = vmatpush.msra.mxu0 %v251
        %284 = vmatpush.msra.mxu0 %v249
        %285 = vmatpush.msra.mxu0 %v247
        %286 = vmatmul.f32.gmra.mxu0 %v265
        %v287 = vpop.f32.mrf.mxu0
        %v288 = vadd.f32 0.0, %v287
        %289 = vmatmul.f32.gmra.mxu0 %v268
        %v290 = vpop.f32.mrf.mxu0
        %v291 = vadd.f32 0.0, %v290
        %292 = vdwg.mxu0
        %293 = vmatpush.msra.mxu0 0.0
        %294 = vmatpush.msra.mxu0 0.0
        %295 = vmatpush.msra.mxu0 0.0
        %296 = vmatpush.msra.mxu0 0.0
        %297 = vmatpush.msra.mxu0 0.0
        %298 = vmatpush.msra.mxu0 0.0
        %299 = vmatpush.msra.mxu0 0.0
        %300 = vmatpush.msra.mxu0 0.0
        %301 = vmatpush.msra.mxu0 %v262
        %302 = vmatpush.msra.mxu0 %v260
        %303 = vmatpush.msra.mxu0 %v258
        %304 = vmatpush.msra.mxu0 %v256
        %305 = vmatpush.msra.mxu0 %v254
        %306 = vmatpush.msra.mxu0 %v252
        %307 = vmatpush.msra.mxu0 %v250
        %308 = vmatpush.msra.mxu0 %v248
        %309 = vmatmul.f32.gmra.mxu0 %v265
        %v310 = vpop.f32.mrf.mxu0
        %v311 = vadd.f32 0.0, %v310
        %312 = vmatmul.f32.gmra.mxu0 %v268
        %v313 = vpop.f32.mrf.mxu0
        %v314 = vadd.f32 0.0, %v313
        %315 = vdwg.mxu0
        %s316 = smul.u32 %s20, 256
        %v317 = vlaneseq
        %v318 = vand.u32 %v317, 127
        %v319 = vadd.s32 %v318, 128
        %v320 = vstv %s316
        %v321 = vadd.s32 %v320, %v318
        %v322 = vadd.s32 %v320, %v319
        %v323 = vld [vmem:[%s226] sm:$0xff]
        %v324 = vld [vmem:[%s226 + $0x8] sm:$0xff]
        %v325 = vld [vmem:[#allocation4] sm:$0xff]
        %v326 = vld [vmem:[#allocation4 + $0x8] sm:$0xff]
        %327 = vset.pattern.permute.xlu0 0
        %328 = vperm.xlu0 %327, %v323
        %v329 = vpop.permute.xlu0 %328
        %330 = vset.pattern.permute.xlu0 0
        %331 = vperm.xlu0 %330, %v324
        %v332 = vpop.permute.xlu0 %331
        %vm333 = vcmp.eq.s32.totalorder %v321, %v329
        %vm334 = vcmp.eq.s32.totalorder %v322, %v329
        %vm335 = vcmp.eq.s32.totalorder %v321, %v332
        %vm336 = vcmp.eq.s32.totalorder %v322, %v332
        %v337 = vsel %vm333, %v288, 0.0
        %v338 = vsel %vm334, %v311, 0.0
        %v339 = vsel %vm335, %v291, 0.0
        %v340 = vsel %vm336, %v314, 0.0
        %v341 = vadd.f32 %v337, %v338
        %342 = vadd.xlane.f32.xlu0 %v341
        %v343 = vpop.xlane.xlu0 %342
        %v344 = vadd.f32 %v339, %v340
        %345 = vadd.xlane.f32.xlu0 %v344
        %v346 = vpop.xlane.xlu0 %345
        %v347 = vadd.f32 %v325, %v343
        %v348 = vadd.f32 %v326, %v346
        %vm349 = vcmask 7168
        %350 = vst.msk [vmem:[#allocation4] sm:$0xff] %vm349, %v347
        %351 = vst.msk [vmem:[#allocation4 + $0x8] sm:$0xff] %vm349, %v348
        %p352 = scmp.lt.s32.totalorder %s20, 0
        // Predicated region
        $region41: #{tpu_custom_call.1} parent=31 // pred_check
          %p353 = pneg %p352
        $region42: #{tpu_custom_call.1} parent=31 // pred_check_branch
          %355 = sbr.rel (%p353) target = $region44
        $region43: #{tpu_custom_call.1} parent=31 // pred_region
          %v356 = vld [vmem:[#allocation2] sm:$0xff]
          %v357 = vld [vmem:[#allocation2 + $0x8] sm:$0xff]
          %v358 = vmax.f32 %v288, %v311
          %359 = vmax.xlane.f32.xlu0 %v358
          %v360 = vpop.xlane.xlu0 %359
          %v361 = vmax.f32 %v291, %v314
          %362 = vmax.xlane.f32.xlu0 %v361
          %v363 = vpop.xlane.xlu0 %362
          %v364 = vmax.f32 %v356, %v360
          %v365 = vmax.f32 %v357, %v363
          %v366 = vsub.f32 %v356, %v364
          %v367 = vsub.f32 %v357, %v365
          %v368 = vmul.f32 %v366, 1.442695
          %v369 = vpow.pop %v368
          %v370 = vmul.f32 %v367, 1.442695
          %v371 = vpow.pop %v370
          %v372 = vld [vmem:[#allocation3] sm:$0xff]
          %v373 = vld [vmem:[#allocation3 + $0x8] sm:$0xff]
          %v374 = vmul.f32 %v369, %v372
          %v375 = vmul.f32 %v371, %v373
          %377 = vset.pattern.permute.xlu0 0
          %378 = vperm.xlu0 %377, %v364
          %v379 = vpop.permute.xlu0 %378
          %382 = vset.pattern.permute.xlu0 0
          %383 = vperm.xlu0 %382, %v365
          %v384 = vpop.permute.xlu0 %383
          %v386 = vsub.f32 %v288, %v379
          %v387 = vsub.f32 %v311, %v379
          %v388 = vsub.f32 %v291, %v384
          %v389 = vsub.f32 %v314, %v384
          %v390 = vmul.f32 %v386, 1.442695
          %v391 = vpow.pop %v390
          %v392 = vmul.f32 %v387, 1.442695
          %v393 = vpow.pop %v392
          %v394 = vmul.f32 %v388, 1.442695
          %v395 = vpow.pop %v394
          %v396 = vmul.f32 %v389, 1.442695
          %v397 = vpow.pop %v396
          %v398 = vadd.f32 %v391, %v393
          %399 = vadd.xlane.f32.xlu0 %v398
          %v400 = vpop.xlane.xlu0 %399
          %v401 = vadd.f32 %v395, %v397
          %402 = vadd.xlane.f32.xlu0 %v401
          %v403 = vpop.xlane.xlu0 %402
          %v404 = vadd.f32 %v374, %v400
          %v405 = vadd.f32 %v375, %v403
          %406 = vst.msk [vmem:[#allocation3] sm:$0xff] %vm349, %v404
          %407 = vst.msk [vmem:[#allocation3 + $0x8] sm:$0xff] %vm349, %v405
          %408 = vst.msk [vmem:[#allocation2] sm:$0xff] %vm349, %v364
          %409 = vst.msk [vmem:[#allocation2 + $0x8] sm:$0xff] %vm349, %v365
        $region44: #{tpu_custom_call.1} parent=31 // pred_fallthru
          _
        // Predicated region
        $region45: #{tpu_custom_call.1} parent=31 // pred_check
          %p410 = pneg %p234
        $region46: #{tpu_custom_call.1} parent=31 // pred_check_branch
          %412 = sbr.rel (%p410) target = $region48
        $region47: #{tpu_custom_call.1} parent=31 // pred_region
          %vm413 = vcmp.lt.s32.totalorder %v321, 200
          %vm414 = vcmp.lt.s32.totalorder %v322, 200
          %v415 = vsel %vm413, %v288, -inf
          %v416 = vsel %vm414, %v311, -inf
          %v417 = vsel %vm413, %v291, -inf
          %v418 = vsel %vm414, %v314, -inf
          %v419 = vld [vmem:[#allocation2] sm:$0xff]
          %v420 = vld [vmem:[#allocation2 + $0x8] sm:$0xff]
          %v421 = vmax.f32 %v415, %v416
          %422 = vmax.xlane.f32.xlu0 %v421
          %v423 = vpop.xlane.xlu0 %422
          %v424 = vmax.f32 %v417, %v418
          %425 = vmax.xlane.f32.xlu0 %v424
          %v426 = vpop.xlane.xlu0 %425
          %v427 = vmax.f32 %v419, %v423
          %v428 = vmax.f32 %v420, %v426
          %v429 = vsub.f32 %v419, %v427
          %v430 = vsub.f32 %v420, %v428
          %v431 = vmul.f32 %v429, 1.442695
          %v432 = vpow.pop %v431
          %v433 = vmul.f32 %v430, 1.442695
          %v434 = vpow.pop %v433
          %v435 = vld [vmem:[#allocation3] sm:$0xff]
          %v436 = vld [vmem:[#allocation3 + $0x8] sm:$0xff]
          %v437 = vmul.f32 %v432, %v435
          %v438 = vmul.f32 %v434, %v436
          %440 = vset.pattern.permute.xlu0 0
          %441 = vperm.xlu0 %440, %v427
          %v442 = vpop.permute.xlu0 %441
          %445 = vset.pattern.permute.xlu0 0
          %446 = vperm.xlu0 %445, %v428
          %v447 = vpop.permute.xlu0 %446
          %v449 = vsub.f32 %v415, %v442
          %v450 = vsub.f32 %v416, %v442
          %v451 = vsub.f32 %v417, %v447
          %v452 = vsub.f32 %v418, %v447
          %v453 = vmul.f32 %v449, 1.442695
          %v454 = vpow.pop %v453
          %v455 = vmul.f32 %v450, 1.442695
          %v456 = vpow.pop %v455
          %v457 = vmul.f32 %v451, 1.442695
          %v458 = vpow.pop %v457
          %v459 = vmul.f32 %v452, 1.442695
          %v460 = vpow.pop %v459
          %v461 = vadd.f32 %v454, %v456
          %462 = vadd.xlane.f32.xlu0 %v461
          %v463 = vpop.xlane.xlu0 %462
          %v464 = vadd.f32 %v458, %v460
          %465 = vadd.xlane.f32.xlu0 %v464
          %v466 = vpop.xlane.xlu0 %465
          %v467 = vadd.f32 %v437, %v463
          %v468 = vadd.f32 %v438, %v466
          %469 = vst.msk [vmem:[#allocation3] sm:$0xff] %vm349, %v467
          %470 = vst.msk [vmem:[#allocation3 + $0x8] sm:$0xff] %vm349, %v468
          %471 = vst.msk [vmem:[#allocation2] sm:$0xff] %vm349, %v427
          %472 = vst.msk [vmem:[#allocation2 + $0x8] sm:$0xff] %vm349, %v428
          %v473 = vld [vmem:[#allocation2] sm:$0xff]
          %v474 = vld [vmem:[#allocation2 + $0x8] sm:$0xff]
          %v475 = vld [vmem:[#allocation3] sm:$0xff]
          %v476 = vld [vmem:[#allocation3 + $0x8] sm:$0xff]
          %v477 = vlog2.pop %v475
          %v478 = vmul.f32 %v477, 0.6931472
          %v479 = vlog2.pop %v476
          %v480 = vmul.f32 %v479, 0.6931472
          %v481 = vadd.f32 %v473, %v478
          %v482 = vadd.f32 %v474, %v480
          %v483 = vld [vmem:[#allocation4] sm:$0xff]
          %v484 = vld [vmem:[#allocation4 + $0x8] sm:$0xff]
          %v485 = vsub.f32 %v481, %v483
          %v486 = vsub.f32 %v482, %v484
          %s487 = smul.u32 %s19, 16
          %v488 = vlaneseq
          %v489 = vshrl.u32 %v488, 7
          %v490 = vadd.s32 %v489, 8
          %v491 = vstv %s487
          %v492 = vadd.s32 %v491, %v489
          %v493 = vadd.s32 %v491, %v490
          %vm494 = vcmp.lt.s32.totalorder %v492, 24
          %vm495 = vcmp.lt.s32.totalorder %v493, 24
          %v496 = vsel %vm494, %v485, 0.0
          %v497 = vsel %vm495, %v486, 0.0
          %498 = vst.msk [vmem:[%s232] sm:$0xff] %vm349, %v496
          %499 = vst.msk [vmem:[%s232 + $0x8] sm:$0xff] %vm349, %v497
        $region48: #{tpu_custom_call.1} parent=31 // pred_fallthru
          _
        %s500 = smul.u32 2, %s19
        %p501 = scmp.lt.s32.totalorder %s500, 3
        %s502 = scalar_select %p501, %s500, 3
        %s503 = smul.addr %s502, 8
        %s504 = scalar_lea.vmem %s3, %s503
        // Predicated region
        $region49: #{tpu_custom_call.1} parent=31 // pred_check
          %p505 = pneg %p123
        $region50: #{tpu_custom_call.1} parent=31 // pred_check_branch
          %507 = sbr.rel (%p505) target = $region52
        $region51: #{tpu_custom_call.1} parent=31 // pred_region
          %s508 = smul.u32 2, %s19
        $region52: #{tpu_custom_call.1} parent=31 // pred_fallthru
          _
      $region32: #{tpu_custom_call.1} parent=5 // pred_fallthru
        _
      %p509 = scmp.le.s32.totalorder 2, %s10
      // Predicated region
      $region53: #{tpu_custom_call.1} parent=5 // pred_check
        %p510 = pneg %p509
      $region54: #{tpu_custom_call.1} parent=5 // pred_check_branch
        %512 = sbr.rel (%p510) target = $region56
      $region55: #{tpu_custom_call.1} parent=5 // pred_region
        %s513 = ssub.s32 %s10, 2
        // Predicated region
        $region57: #{tpu_custom_call.1} parent=55 // pred_check
          %p514 = pneg %p129
        $region58: #{tpu_custom_call.1} parent=55 // pred_check_branch
          %516 = sbr.rel (%p514) target = $region60
        $region59: #{tpu_custom_call.1} parent=55 // pred_region
          %s517 = smul.u32 2, %s21
          %p518 = scmp.lt.s32.totalorder %s517, 3
          %s519 = scalar_select %p518, %s517, 3
          %s520 = smul.addr %s519, 8
          %s521 = scalar_lea.vmem %s3, %s520
        $region60: #{tpu_custom_call.1} parent=55 // pred_fallthru
          _
      $region56: #{tpu_custom_call.1} parent=5 // pred_fallthru
        _
    $region6: #{tpu_custom_call.1} parent=1 // loop_footer
      %s14 = sadd.s32 1, %s10
    $region7: #{tpu_custom_call.1} parent=1 // loop_footer_branch
      %9 = sbr.rel target = $region3
    $region8: #{tpu_custom_call.1} parent=1 // loop_exit
      _
    %522 = vsyncpa [#allocation6], 1
    %s523 = scalar_lea.sflag [#allocation6], 1
    %524 = vsyncpa %s523, 1

</llo_original>
